<compile_context>
chip_gen: v6e
topology: v6e:2x2x1
jax: 0.10.0
libtpu: 0.0.40
codegen_flags: <defaults>
</compile_context>

<pallas_src>
import functools
import math

import numpy as np
import jax
import jax.numpy as jnp
from jax.experimental import pallas as pl
from jax.experimental.pallas import tpu as pltpu


def _se_gate_kernel(x_ref, w1t_ref, b1_ref, w2t_ref, b2_ref, gate_ref, acc_ref, *, inv_hw):
    """Squeeze (spatial mean accumulated over spatial tiles) + excitation MLP."""
    s = pl.program_id(1)

    @pl.when(s == 0)
    def _():
        acc_ref[...] = jnp.zeros_like(acc_ref)

    # Partial spatial sum for this tile: (bt, C, ts) -> (bt, C), f32 accumulation.
    acc_ref[...] += jnp.sum(x_ref[...].astype(jnp.float32), axis=-1)

    @pl.when(s == pl.num_programs(1) - 1)
    def _():
        pooled = acc_ref[...] * inv_hw                                   # (bt, C)
        # 1x1 convs on a (B, C, 1, 1) tensor == dense layers; weights pre-transposed
        # outside the kernel so there is no in-kernel (XLU) transpose.
        h = jnp.dot(pooled, w1t_ref[...],
                    preferred_element_type=jnp.float32) + b1_ref[...]    # (bt, se_w)
        h = h * jax.nn.sigmoid(h)                                        # Swish
        g = jnp.dot(h, w2t_ref[...],
                    preferred_element_type=jnp.float32) + b2_ref[...]    # (bt, C)
        gate_ref[...] = jax.nn.sigmoid(g)[..., None].astype(gate_ref.dtype)


def _se_scale_kernel(x_ref, gate_ref, o_ref):
    """y = x * gate, gate broadcast along the spatial (lane) axis."""
    o_ref[...] = x_ref[...] * gate_ref[...]          # (bt,C,ts) * (bt,C,1)


def _pick_spatial_tile(hw, max_tile=2048):
    """128-aligned spatial tile that divides HW (falls back to the full extent)."""
    if hw % 128 != 0:
        return hw
    t = min(hw, max_tile)
    while hw % t != 0:
        t -= 128
    return t


def _pick_batch_tile(b, max_tile=8):
    """Largest divisor of B up to max_tile (keeps per-block VMEM bounded)."""
    t = min(b, max_tile)
    while b % t != 0:
        t -= 1
    return t


def se_forward(x, w1, b1, w2, b2):
    """SE forward. x: (B, C, H, W); w1: (se_w, C); b1: (se_w,); w2: (C, se_w); b2: (C,)."""
    B, C, H, W = x.shape
    se_w = w1.shape[0]
    HW = H * W

    x3 = x.reshape(B, C, HW)                 # spatial is the lane (last) dim
    w1t = jnp.transpose(w1)                  # (C, se_w)  -- pre-transposed outside kernel
    w2t = jnp.transpose(w2)                  # (se_w, C)
    b1r = b1.reshape(1, se_w)
    b2r = b2.reshape(1, C)

    ts = _pick_spatial_tile(HW)
    n_s = HW // ts
    bt = _pick_batch_tile(B)
    n_b = B // bt

    # ---- Kernel 1: squeeze (tiled spatial reduction) + excitation MLP -> gate (B, C, 1) ----
    gate3 = pl.pallas_call(
        functools.partial(_se_gate_kernel, inv_hw=1.0 / float(HW)),
        out_shape=jax.ShapeDtypeStruct((B, C, 1), x.dtype),
        grid=(n_b, n_s),
        in_specs=[
            pl.BlockSpec((bt, C, ts), lambda b, s: (b, 0, s)),
            pl.BlockSpec((C, se_w), lambda b, s: (0, 0)),
            pl.BlockSpec((1, se_w), lambda b, s: (0, 0)),
            pl.BlockSpec((se_w, C), lambda b, s: (0, 0)),
            pl.BlockSpec((1, C), lambda b, s: (0, 0)),
        ],
        out_specs=pl.BlockSpec((bt, C, 1), lambda b, s: (b, 0, 0)),
        scratch_shapes=[pltpu.VMEM((bt, C), jnp.float32)],
        compiler_params=pltpu.CompilerParams(
            dimension_semantics=("parallel", "arbitrary")),
    )(x3, w1t, b1r, w2t, b2r)

    # ---- Kernel 2: elementwise scale, tiled over (batch, spatial), both parallel ----
    y3 = pl.pallas_call(
        _se_scale_kernel,
        out_shape=jax.ShapeDtypeStruct((B, C, HW), x.dtype),
        grid=(n_b, n_s),
        in_specs=[
            pl.BlockSpec((bt, C, ts), lambda b, s: (b, 0, s)),
            pl.BlockSpec((bt, C, 1), lambda b, s: (b, 0, 0)),
        ],
        out_specs=pl.BlockSpec((bt, C, ts), lambda b, s: (b, 0, s)),
        compiler_params=pltpu.CompilerParams(
            dimension_semantics=("parallel", "parallel")),
    )(x3, gate3)

    return y3.reshape(B, C, H, W)


if __name__ == "__main__":
    # Small shapes consistent with the module: SE(in_w=32, se_w=8), 16x16 spatial, batch 2.
    B, C, se_w, H, W = 2, 32, 8, 16, 16

    key = jax.random.PRNGKey(0)
    kx, k1, k2, k3, k4 = jax.random.split(key, 5)

    x = jax.random.normal(kx, (B, C, H, W), dtype=jnp.float32)

    # Conv2d(1x1) parameters (kernel dims squeezed), nn.Conv2d-style uniform init.
    bound1 = 1.0 / math.sqrt(C)
    bound2 = 1.0 / math.sqrt(se_w)
    w1 = jax.random.uniform(k1, (se_w, C), jnp.float32, -bound1, bound1)
    b1 = jax.random.uniform(k2, (se_w,), jnp.float32, -bound1, bound1)
    w2 = jax.random.uniform(k3, (C, se_w), jnp.float32, -bound2, bound2)
    b2 = jax.random.uniform(k4, (C,), jnp.float32, -bound2, bound2)

    y = jax.block_until_ready(se_forward(x, w1, b1, w2, b2))

    # Pure-JAX reference of the exact PyTorch SE semantics (Swish activation).
    pooled = x.mean(axis=(2, 3))                       # AdaptiveAvgPool2d((1,1))
    h = pooled @ w1.T + b1                             # Conv2d(C, se_w, 1, bias=True)
    h = h * jax.nn.sigmoid(h)                          # Swish
    g = jax.nn.sigmoid(h @ w2.T + b2)                  # Conv2d(se_w, C, 1) + Sigmoid
    y_ref = x * g[:, :, None, None]

    assert y.shape == x.shape
    np.testing.assert_allclose(np.asarray(y), np.asarray(y_ref), rtol=1e-5, atol=1e-5)

    print("KERNEL_OK")
</pallas_src>

<mosaic_0001>
module attributes {stable_mosaic.version = 11 : i64} {
  func.func @_se_gate_kernel(%arg0: i32, %arg1: i32, %arg2: memref<2x32x256xf32, #tpu.memory_space<vmem>>, %arg3: memref<32x8xf32, #tpu.memory_space<vmem>>, %arg4: memref<1x8xf32, #tpu.memory_space<vmem>>, %arg5: memref<8x32xf32, #tpu.memory_space<vmem>>, %arg6: memref<1x32xf32, #tpu.memory_space<vmem>>, %arg7: memref<2x32x1xf32, #tpu.memory_space<vmem>>, %arg8: memref<2x32xf32, #tpu.memory_space<vmem>>) attributes {dimension_semantics = [#tpu.dimension_semantics<parallel>, #tpu.dimension_semantics<arbitrary>], iteration_bounds = array<i64: 1, 1>, scalar_prefetch = 0 : i64, scratch_operands = 1 : i64, tpu.core_type = #tpu.core_type<tc>, window_params = [{transform_indices = @transform_0, window_bounds = array<i64: 2, 32, 256>}, {pipeline_mode = #tpu.pipeline_mode<synchronous>, transform_indices = @transform_1, window_bounds = array<i64: 32, 8>}, {pipeline_mode = #tpu.pipeline_mode<synchronous>, transform_indices = @transform_2, window_bounds = array<i64: 1, 8>}, {pipeline_mode = #tpu.pipeline_mode<synchronous>, transform_indices = @transform_3, window_bounds = array<i64: 8, 32>}, {pipeline_mode = #tpu.pipeline_mode<synchronous>, transform_indices = @transform_4, window_bounds = array<i64: 1, 32>}, {transform_indices = @transform_5, window_bounds = array<i64: 2, 32, 1>}]} {
    %c0_i32 = arith.constant 0 : i32
    %0 = arith.cmpi eq, %arg1, %c0_i32 : i32
    %1 = arith.extui %0 : i1 to i32
    %c0_i32_0 = arith.constant 0 : i32
    %2 = arith.cmpi ne, %1, %c0_i32_0 : i32
    scf.if %2 {
      %cst_9 = arith.constant 0.000000e+00 : f32
      %11 = vector.broadcast %cst_9 : f32 to vector<2x32xf32>
      %c0_10 = arith.constant 0 : index
      %c0_11 = arith.constant 0 : index
      %12 = vector.load %arg8[%c0_10, %c0_11] : memref<2x32xf32, #tpu.memory_space<vmem>>, vector<2x32xf32>
      tpu.vector_store %arg8[%c0_10, %c0_11], %11 {strides = array<i32>} : memref<2x32xf32, #tpu.memory_space<vmem>>, vector<2x32xf32>,
    } else {
    }
    %c0 = arith.constant 0 : index
    %c0_1 = arith.constant 0 : index
    %3 = vector.load %arg8[%c0, %c0_1] : memref<2x32xf32, #tpu.memory_space<vmem>>, vector<2x32xf32>
    %c0_2 = arith.constant 0 : index
    %c0_3 = arith.constant 0 : index
    %c0_4 = arith.constant 0 : index
    %4 = vector.load %arg2[%c0_2, %c0_3, %c0_4] : memref<2x32x256xf32, #tpu.memory_space<vmem>>, vector<2x32x256xf32>
    %cst = arith.constant dense<0.000000e+00> : vector<2x32xf32>
    %5 = vector.multi_reduction <add>, %4, %cst [2] : vector<2x32x256xf32> to vector<2x32xf32>
    %6 = arith.addf %3, %5 : vector<2x32xf32>
    %c0_5 = arith.constant 0 : index
    %c0_6 = arith.constant 0 : index
    %7 = vector.load %arg8[%c0_5, %c0_6] : memref<2x32xf32, #tpu.memory_space<vmem>>, vector<2x32xf32>
    tpu.vector_store %arg8[%c0_5, %c0_6], %6 {strides = array<i32>} : memref<2x32xf32, #tpu.memory_space<vmem>>, vector<2x32xf32>,
    %c0_i32_7 = arith.constant 0 : i32
    %8 = arith.cmpi eq, %arg1, %c0_i32_7 : i32
    %9 = arith.extui %8 : i1 to i32
    %c0_i32_8 = arith.constant 0 : i32
    %10 = arith.cmpi ne, %9, %c0_i32_8 : i32
    scf.if %10 {
      %c0_9 = arith.constant 0 : index
      %c0_10 = arith.constant 0 : index
      %11 = vector.load %arg8[%c0_9, %c0_10] : memref<2x32xf32, #tpu.memory_space<vmem>>, vector<2x32xf32>
      %cst_11 = arith.constant 3.906250e-03 : f32
      %12 = vector.broadcast %cst_11 : f32 to vector<2x32xf32>
      %13 = arith.mulf %11, %12 : vector<2x32xf32>
      %c0_12 = arith.constant 0 : index
      %c0_13 = arith.constant 0 : index
      %14 = vector.load %arg3[%c0_12, %c0_13] : memref<32x8xf32, #tpu.memory_space<vmem>>, vector<32x8xf32>
      %cst_14 = arith.constant dense<0.000000e+00> : vector<2x8xf32>
      %15 = tpu.matmul %13, %14, %cst_14 {dimension_numbers = #tpu.dot_dimension_numbers<[1], [0], [0], [1], [0, 0, 1, 1], [], []>} : vector<2x32xf32>, vector<32x8xf32>, vector<2x8xf32> -> vector<2x8xf32>
      %c0_15 = arith.constant 0 : index
      %c0_16 = arith.constant 0 : index
      %16 = vector.load %arg4[%c0_15, %c0_16] : memref<1x8xf32, #tpu.memory_space<vmem>>, vector<1x8xf32>
      %17 = vector.broadcast %16 : vector<1x8xf32> to vector<2x8xf32>
      %18 = arith.addf %15, %17 : vector<2x8xf32>
      %19 = arith.negf %18 : vector<2x8xf32>
      %20 = math.exp %19 : vector<2x8xf32>
      %cst_17 = arith.constant 1.000000e+00 : f32
      %21 = vector.broadcast %cst_17 : f32 to vector<2x8xf32>
      %22 = arith.addf %21, %20 : vector<2x8xf32>
      %23 = arith.divf %21, %22 : vector<2x8xf32>
      %24 = arith.mulf %18, %23 : vector<2x8xf32>
      %c0_18 = arith.constant 0 : index
      %c0_19 = arith.constant 0 : index
      %25 = vector.load %arg5[%c0_18, %c0_19] : memref<8x32xf32, #tpu.memory_space<vmem>>, vector<8x32xf32>
      %cst_20 = arith.constant dense<0.000000e+00> : vector<2x32xf32>
      %26 = tpu.matmul %24, %25, %cst_20 {dimension_numbers = #tpu.dot_dimension_numbers<[1], [0], [0], [1], [0, 0, 1, 1], [], []>} : vector<2x8xf32>, vector<8x32xf32>, vector<2x32xf32> -> vector<2x32xf32>
      %c0_21 = arith.constant 0 : index
      %c0_22 = arith.constant 0 : index
      %27 = vector.load %arg6[%c0_21, %c0_22] : memref<1x32xf32, #tpu.memory_space<vmem>>, vector<1x32xf32>
      %28 = vector.broadcast %27 : vector<1x32xf32> to vector<2x32xf32>
      %29 = arith.addf %26, %28 : vector<2x32xf32>
      %30 = arith.negf %29 : vector<2x32xf32>
      %31 = math.exp %30 : vector<2x32xf32>
      %cst_23 = arith.constant 1.000000e+00 : f32
      %32 = vector.broadcast %cst_23 : f32 to vector<2x32xf32>
      %33 = arith.addf %32, %31 : vector<2x32xf32>
      %34 = arith.divf %32, %33 : vector<2x32xf32>
      %35 = vector.shape_cast %34 : vector<2x32xf32> to vector<2x32x1xf32>
      %c0_24 = arith.constant 0 : index
      %c0_25 = arith.constant 0 : index
      %c0_26 = arith.constant 0 : index
      %36 = vector.load %arg7[%c0_24, %c0_25, %c0_26] : memref<2x32x1xf32, #tpu.memory_space<vmem>>, vector<2x32x1xf32>
      tpu.vector_store %arg7[%c0_24, %c0_25, %c0_26], %35 {strides = array<i32>} : memref<2x32x1xf32, #tpu.memory_space<vmem>>, vector<2x32x1xf32>,
    } else {
    }
    return
  }
  func.func @transform_0(%arg0: i32, %arg1: i32) -> (i32, i32, i32) {
    %c0_i32 = arith.constant 0 : i32
    %c0_i32_0 = arith.constant 0 : i32
    return %arg0, %c0_i32, %arg1 : i32, i32, i32
  }
  func.func @transform_1(%arg0: i32, %arg1: i32) -> (i32, i32) {
    %c0_i32 = arith.constant 0 : i32
    %c0_i32_0 = arith.constant 0 : i32
    %c0_i32_1 = arith.constant 0 : i32
    return %c0_i32, %c0_i32_0 : i32, i32
  }
  func.func @transform_2(%arg0: i32, %arg1: i32) -> (i32, i32) {
    %c0_i32 = arith.constant 0 : i32
    %c0_i32_0 = arith.constant 0 : i32
    %c0_i32_1 = arith.constant 0 : i32
    return %c0_i32, %c0_i32_0 : i32, i32
  }
  func.func @transform_3(%arg0: i32, %arg1: i32) -> (i32, i32) {
    %c0_i32 = arith.constant 0 : i32
    %c0_i32_0 = arith.constant 0 : i32
    %c0_i32_1 = arith.constant 0 : i32
    return %c0_i32, %c0_i32_0 : i32, i32
  }
  func.func @transform_4(%arg0: i32, %arg1: i32) -> (i32, i32) {
    %c0_i32 = arith.constant 0 : i32
    %c0_i32_0 = arith.constant 0 : i32
    %c0_i32_1 = arith.constant 0 : i32
    return %c0_i32, %c0_i32_0 : i32, i32
  }
  func.func @transform_5(%arg0: i32, %arg1: i32) -> (i32, i32, i32) {
    %c0_i32 = arith.constant 0 : i32
    %c0_i32_0 = arith.constant 0 : i32
    %c0_i32_1 = arith.constant 0 : i32
    return %arg0, %c0_i32, %c0_i32_0 : i32, i32, i32
  }
}

</mosaic_0001>

<llo_original>
// kernel: tpu_custom_call.1
$region0: #{tpu_custom_call.1}
  #allocation0 [shape = 'u32[]', space=smem, size = 0x4, offset = 0x4, fixed_abs, tag = 'smem constant byte address 0x4 - core index']
  #allocation1 [shape = 'u32[144,128]{1,0:T(1,128)}', space=vmem, size = 0x12000, scoped, tag = 'internal scratch']
  #allocation2 [shape = 'f32[2,32]{1,0:T(2,128)}', space=vmem, size = 0x400, scoped, tag = 'scratch operand']
  %s0 = inlined_call_operand.hbm [shape: f32[2,32,256], index: 0, kind: input, shape index: {}]
  %s1 = inlined_call_operand.vmem [shape: f32[32,8], index: 1, kind: input, shape index: {}]
  %s2 = inlined_call_operand.vmem [shape: f32[1,8], index: 2, kind: input, shape index: {}]
  %s3 = inlined_call_operand.vmem [shape: f32[8,32], index: 3, kind: input, shape index: {}]
  %s4 = inlined_call_operand.vmem [shape: f32[1,32], index: 4, kind: input, shape index: {}]
  %s5 = inlined_call_operand.vmem [shape: f32[2,32,1], index: 5, kind: output, shape index: {}]
  %s6 = sld [smem:[#allocation0]]
  $region42: #{tpu_custom_call.1} parent=0
    _
  %s8 = ssub.s32 1, %s6
  %s9 = scalar_select 0, %s8, %s6
  $region1: #{tpu_custom_call.1} parent=0
    #allocation3 [shape = 'u8[65536]{0}', space=vmem, size = 0x10000, scoped, tag = 'input window, operand 0, single buffered']
    #allocation4 [shape = 's32[1]{0}', space=sflag, size = 0x4, scoped, tag = 'scoped memory for tpu_custom_call.1']
    %10 = vsyncpa [#allocation4], 0
    // Predicated region
    $region2: #{tpu_custom_call.1} parent=1 // pred_check
      _
    $region3: #{tpu_custom_call.1} parent=1 // pred_check_branch
      %12 = sbr.rel (0) target = $region5
    $region4: #{tpu_custom_call.1} parent=1 // pred_region
      %s14 = ssub.s32 2048, 2048
      %15 = vsyncadd [#allocation4], %s14
      %s16 = sshll.u32 [#allocation3], 4
      %s17 = int_to_ptr.vmem [resolvable:$true] %s16
      %22 = dma.hbm_to_vmem [thread:$0]  %s0, 2048, %s17, [#allocation4], 256, 256, 16
    $region5: #{tpu_custom_call.1} parent=1 // pred_fallthru
      _
    // Predicated region
    $region6: #{tpu_custom_call.1} parent=1 // pred_check
      _
    $region7: #{tpu_custom_call.1} parent=1 // pred_check_branch
      %24 = sbr.rel (0) target = $region9
    $region8: #{tpu_custom_call.1} parent=1 // pred_region
      _
    $region9: #{tpu_custom_call.1} parent=1 // pred_fallthru
      _
    // Predicated region
    $region10: #{tpu_custom_call.1} parent=1 // pred_check
      _
    $region11: #{tpu_custom_call.1} parent=1 // pred_check_branch
      %26 = sbr.rel (0) target = $region13
    $region12: #{tpu_custom_call.1} parent=1 // pred_region
      _
    $region13: #{tpu_custom_call.1} parent=1 // pred_fallthru
      _
    // Predicated region
    $region14: #{tpu_custom_call.1} parent=1 // pred_check
      _
    $region15: #{tpu_custom_call.1} parent=1 // pred_check_branch
      %28 = sbr.rel (0) target = $region17
    $region16: #{tpu_custom_call.1} parent=1 // pred_region
      _
    $region17: #{tpu_custom_call.1} parent=1 // pred_fallthru
      _
    // Predicated region
    $region18: #{tpu_custom_call.1} parent=1 // pred_check
      _
    $region19: #{tpu_custom_call.1} parent=1 // pred_check_branch
      %30 = sbr.rel (0) target = $region21
    $region20: #{tpu_custom_call.1} parent=1 // pred_region
      _
    $region21: #{tpu_custom_call.1} parent=1 // pred_fallthru
      _
    // Predicated region
    $region22: #{tpu_custom_call.1} parent=1 // pred_check
      _
    $region23: #{tpu_custom_call.1} parent=1 // pred_check_branch
      %32 = sbr.rel (0) target = $region25
    $region24: #{tpu_custom_call.1} parent=1 // pred_region
      %33 = dma.done [#allocation4], 2048
    $region25: #{tpu_custom_call.1} parent=1 // pred_fallthru
      _
    %p34 = scmp.eq.s32.totalorder 0, 0
    // Predicated region
    $region26: #{tpu_custom_call.1} parent=1 // pred_check
      %p35 = pneg %p34
    $region27: #{tpu_custom_call.1} parent=1 // pred_check_branch
      %37 = sbr.rel (%p35) target = $region29
    $region28: #{tpu_custom_call.1} parent=1 // pred_region
      %vm38 = vcmask 254976
      %39 = vst.msk [vmem:[#allocation2] sm:$0x3] %vm38, 0.0
    $region29: #{tpu_custom_call.1} parent=1 // pred_fallthru
      _
    %v40 = vld [vmem:[#allocation2] sm:$0x3]
    %v41 = vld [vmem:[#allocation3] sm:$0xff]
    %v42 = vld [vmem:[#allocation3 + $0x8] sm:$0xff]
    %v43 = vld [vmem:[#allocation3 + $0x10] sm:$0xff]
    %v44 = vld [vmem:[#allocation3 + $0x18] sm:$0xff]
    %v45 = vld [vmem:[#allocation3 + $0x20] sm:$0xff]
    %v46 = vld [vmem:[#allocation3 + $0x28] sm:$0xff]
    %v47 = vld [vmem:[#allocation3 + $0x30] sm:$0xff]
    %v48 = vld [vmem:[#allocation3 + $0x38] sm:$0xff]
    %v49 = vld [vmem:[#allocation3 + $0x40] sm:$0xff]
    %v50 = vld [vmem:[#allocation3 + $0x48] sm:$0xff]
    %v51 = vld [vmem:[#allocation3 + $0x50] sm:$0xff]
    %v52 = vld [vmem:[#allocation3 + $0x58] sm:$0xff]
    %v53 = vld [vmem:[#allocation3 + $0x60] sm:$0xff]
    %v54 = vld [vmem:[#allocation3 + $0x68] sm:$0xff]
    %v55 = vld [vmem:[#allocation3 + $0x70] sm:$0xff]
    %v56 = vld [vmem:[#allocation3 + $0x78] sm:$0xff]
    %v57 = vadd.f32 %v41, %v42
    %58 = vadd.xlane.f32.xlu0 %v57
    %v59 = vpop.xlane.xlu0 %58
    %v60 = vadd.f32 %v43, %v44
    %61 = vadd.xlane.f32.xlu0 %v60
    %v62 = vpop.xlane.xlu0 %61
    %v63 = vadd.f32 %v45, %v46
    %64 = vadd.xlane.f32.xlu0 %v63
    %v65 = vpop.xlane.xlu0 %64
    %v66 = vadd.f32 %v47, %v48
    %67 = vadd.xlane.f32.xlu0 %v66
    %v68 = vpop.xlane.xlu0 %67
    %v69 = vadd.f32 %v49, %v50
    %70 = vadd.xlane.f32.xlu0 %v69
    %v71 = vpop.xlane.xlu0 %70
    %v72 = vadd.f32 %v51, %v52
    %73 = vadd.xlane.f32.xlu0 %v72
    %v74 = vpop.xlane.xlu0 %73
    %v75 = vadd.f32 %v53, %v54
    %76 = vadd.xlane.f32.xlu0 %v75
    %v77 = vpop.xlane.xlu0 %76
    %v78 = vadd.f32 %v55, %v56
    %79 = vadd.xlane.f32.xlu0 %v78
    %v80 = vpop.xlane.xlu0 %79
    %v89 = vlaneseq
    %v90 = vand.u32 %v89, 127
    %v91 = vlaneseq
    %v92 = vshrl.u32 %v91, 7
    %v93 = vsub.s32 %v90, %v92
    %v94 = vrot.slane %v59, %v93
    %v95 = vadd.s32 %v90, 4294967288
    %v96 = vlaneseq
    %v97 = vshrl.u32 %v96, 7
    %v98 = vsub.s32 %v95, %v97
    %v99 = vrot.slane %v62, %v98
    %vm100 = vcmask 130112
    %v101 = vsel %vm100, %v99, %v94
    %v102 = vadd.s32 %v90, 4294967280
    %v103 = vlaneseq
    %v104 = vshrl.u32 %v103, 7
    %v105 = vsub.s32 %v102, %v104
    %v106 = vrot.slane %v65, %v105
    %vm107 = vcmask 195712
    %v108 = vsel %vm107, %v106, %v101
    %v109 = vadd.s32 %v90, 4294967272
    %v110 = vlaneseq
    %v111 = vshrl.u32 %v110, 7
    %v112 = vsub.s32 %v109, %v111
    %v113 = vrot.slane %v68, %v112
    %vm114 = vcmask 261312
    %v115 = vsel %vm114, %v113, %v108
    %v116 = vlaneseq
    %v117 = vshrl.u32 %v116, 7
    %v118 = vsub.s32 %v90, %v117
    %v119 = vrot.slane %v71, %v118
    %v120 = vlaneseq
    %v121 = vshrl.u32 %v120, 7
    %v122 = vsub.s32 %v95, %v121
    %v123 = vrot.slane %v74, %v122
    %v124 = vsel %vm100, %v123, %v119
    %v125 = vlaneseq
    %v126 = vshrl.u32 %v125, 7
    %v127 = vsub.s32 %v102, %v126
    %v128 = vrot.slane %v77, %v127
    %v129 = vsel %vm107, %v128, %v124
    %v130 = vlaneseq
    %v131 = vshrl.u32 %v130, 7
    %v132 = vsub.s32 %v109, %v131
    %v133 = vrot.slane %v80, %v132
    %v134 = vsel %vm114, %v133, %v129
    %vm135 = vcmask 1041409
    %v136 = vsel %vm135, %v134, %v115
    %v138 = vadd.f32 %v40, %v136
    %vm139 = vcmask 254976
    %140 = vst.msk [vmem:[#allocation2] sm:$0x3] %vm139, %v138
    // Predicated region
    $region30: #{tpu_custom_call.1} parent=1 // pred_check
      %p141 = pneg %p34
    $region31: #{tpu_custom_call.1} parent=1 // pred_check_branch
      %143 = sbr.rel (%p141) target = $region33
    $region32: #{tpu_custom_call.1} parent=1 // pred_region
      %v144 = vld [vmem:[#allocation2] sm:$0x3]
      %v145 = vmul.f32 %v144, 0.00390625
      %v146 = vld [vmem:[%s1] sm:$0xff]
      %v147 = vld [vmem:[%s1 + $0x8] sm:$0xff]
      %v148 = vld [vmem:[%s1 + $0x10] sm:$0xff]
      %v149 = vld [vmem:[%s1 + $0x18] sm:$0xff]
      %v150 = vld [vmem:[%s2] sm:$0x1]
      %v152 = vlaneseq
      %v153 = vshrl.u32 %v152, 7
      %v154 = vsub.s32 0, %v153
      %v155 = vrot.slane %v150, %v154
      %vm157 = vcmask 261120
      %v159 = vsel %vm157, %v145, 0
      %161 = vmatprep.subr.mxu0 0.0
      %162 = vmatpush1.msra.mxu0 0.0
      %163 = vmatprep.subr.mxu0 0.0
      %164 = vmatpush1.msra.mxu0 0.0
      %165 = vmatprep.subr.mxu0 0.0
      %166 = vmatpush1.msra.mxu0 0.0
      %167 = vmatprep.subr.mxu0 0.0
      %168 = vmatpush1.msra.mxu0 0.0
      %169 = vmatprep.subr.mxu0 0.0
      %170 = vmatpush1.msra.mxu0 0.0
      %171 = vmatprep.subr.mxu0 0.0
      %172 = vmatpush1.msra.mxu0 0.0
      %173 = vmatprep.subr.mxu0 0.0
      %174 = vmatpush1.msra.mxu0 0.0
      %175 = vmatprep.subr.mxu0 0.0
      %176 = vmatpush1.msra.mxu0 0.0
      %177 = vmatprep.subr.mxu0 0.0
      %178 = vmatpush1.msra.mxu0 0.0
      %179 = vmatprep.subr.mxu0 0.0
      %180 = vmatpush1.msra.mxu0 0.0
      %181 = vmatprep.subr.mxu0 0.0
      %182 = vmatpush1.msra.mxu0 0.0
      %183 = vmatprep.subr.mxu0 0.0
      %184 = vmatpush1.msra.mxu0 0.0
      %185 = vmatprep.subr.mxu0 0.0
      %186 = vmatpush1.msra.mxu0 %v149
      %187 = vmatprep.subr.mxu0 0.0
      %188 = vmatpush1.msra.mxu0 %v148
      %189 = vmatprep.subr.mxu0 0.0
      %190 = vmatpush1.msra.mxu0 %v147
      %191 = vmatprep.subr.mxu0 0.0
      %192 = vmatpush1.msra.mxu0 %v146
      %193 = vmatprep.subr.mxu0 0.0
      %194 = vmatpush2.msra.mxu0 0.0
      %195 = vmatprep.subr.mxu0 0.0
      %196 = vmatpush2.msra.mxu0 0.0
      %197 = vmatprep.subr.mxu0 0.0
      %198 = vmatpush2.msra.mxu0 0.0
      %199 = vmatprep.subr.mxu0 0.0
      %200 = vmatpush2.msra.mxu0 0.0
      %201 = vmatprep.subr.mxu0 0.0
      %202 = vmatpush2.msra.mxu0 0.0
      %203 = vmatprep.subr.mxu0 0.0
      %204 = vmatpush2.msra.mxu0 0.0
      %205 = vmatprep.subr.mxu0 0.0
      %206 = vmatpush2.msra.mxu0 0.0
      %207 = vmatprep.subr.mxu0 0.0
      %208 = vmatpush2.msra.mxu0 0.0
      %209 = vmatprep.subr.mxu0 0.0
      %210 = vmatpush2.msra.mxu0 0.0
      %211 = vmatprep.subr.mxu0 0.0
      %212 = vmatpush2.msra.mxu0 0.0
      %213 = vmatprep.subr.mxu0 0.0
      %214 = vmatpush2.msra.mxu0 0.0
      %215 = vmatprep.subr.mxu0 0.0
      %216 = vmatpush2.msra.mxu0 0.0
      %217 = vmatprep.subr.mxu0 0.0
      %218 = vmatpush2.msra.mxu0 0.0
      %219 = vmatprep.subr.mxu0 0.0
      %220 = vmatpush2.msra.mxu0 0.0
      %221 = vmatprep.subr.mxu0 0.0
      %222 = vmatpush2.msra.mxu0 0.0
      %223 = vmatprep.subr.mxu0 0.0
      %224 = vmatpush2.msra.mxu0 0.0
      %225 = vmatprep.mubr.f32.mxu0 0.0
      %226 = vmatmul.mubr.f32.gmra.mxu0 %v159
      %v227 = vpop.f32.mrf.mxu0
      %v228 = vadd.f32 %v155, %v227
      %v229 = vpop.f32.mrf.mxu0
      %230 = vdwg.mxu0
      %v231 = vxor.u32 %v228, 2147483648
      %v232 = vmul.f32 %v231, 1.442695
      %v233 = vpow.pop %v232
      %v234 = vadd.f32 %v233, 1.0
      %v235 = vrcp.pop %v234
      %v236 = vmul.f32 1.0, %v235
      %v237 = vmul.f32 %v228, %v236
      %v238 = vld [vmem:[%s3] sm:$0xff]
      %v239 = vld [vmem:[%s4] sm:$0x1]
      %v241 = vlaneseq
      %v242 = vshrl.u32 %v241, 7
      %v243 = vsub.s32 0, %v242
      %v244 = vrot.slane %v239, %v243
      %vm246 = vcmask 64512
      %v248 = vsel %vm246, %v237, 0
      %250 = vmatprep.subr.mxu0 0.0
      %251 = vmatpush1.msra.mxu0 0.0
      %252 = vmatprep.subr.mxu0 0.0
      %253 = vmatpush1.msra.mxu0 0.0
      %254 = vmatprep.subr.mxu0 0.0
      %255 = vmatpush1.msra.mxu0 0.0
      %256 = vmatprep.subr.mxu0 0.0
      %257 = vmatpush1.msra.mxu0 0.0
      %258 = vmatprep.subr.mxu0 0.0
      %259 = vmatpush1.msra.mxu0 0.0
      %260 = vmatprep.subr.mxu0 0.0
      %261 = vmatpush1.msra.mxu0 0.0
      %262 = vmatprep.subr.mxu0 0.0
      %263 = vmatpush1.msra.mxu0 0.0
      %264 = vmatprep.subr.mxu0 0.0
      %265 = vmatpush1.msra.mxu0 0.0
      %266 = vmatprep.subr.mxu0 0.0
      %267 = vmatpush1.msra.mxu0 0.0
      %268 = vmatprep.subr.mxu0 0.0
      %269 = vmatpush1.msra.mxu0 0.0
      %270 = vmatprep.subr.mxu0 0.0
      %271 = vmatpush1.msra.mxu0 0.0
      %272 = vmatprep.subr.mxu0 0.0
      %273 = vmatpush1.msra.mxu0 0.0
      %274 = vmatprep.subr.mxu0 0.0
      %275 = vmatpush1.msra.mxu0 0.0
      %276 = vmatprep.subr.mxu0 0.0
      %277 = vmatpush1.msra.mxu0 0.0
      %278 = vmatprep.subr.mxu0 0.0
      %279 = vmatpush1.msra.mxu0 0.0
      %280 = vmatprep.subr.mxu0 0.0
      %281 = vmatpush1.msra.mxu0 %v238
      %282 = vmatprep.subr.mxu0 0.0
      %283 = vmatpush2.msra.mxu0 0.0
      %284 = vmatprep.subr.mxu0 0.0
      %285 = vmatpush2.msra.mxu0 0.0
      %286 = vmatprep.subr.mxu0 0.0
      %287 = vmatpush2.msra.mxu0 0.0
      %288 = vmatprep.subr.mxu0 0.0
      %289 = vmatpush2.msra.mxu0 0.0
      %290 = vmatprep.subr.mxu0 0.0
      %291 = vmatpush2.msra.mxu0 0.0
      %292 = vmatprep.subr.mxu0 0.0
      %293 = vmatpush2.msra.mxu0 0.0
      %294 = vmatprep.subr.mxu0 0.0
      %295 = vmatpush2.msra.mxu0 0.0
      %296 = vmatprep.subr.mxu0 0.0
      %297 = vmatpush2.msra.mxu0 0.0
      %298 = vmatprep.subr.mxu0 0.0
      %299 = vmatpush2.msra.mxu0 0.0
      %300 = vmatprep.subr.mxu0 0.0
      %301 = vmatpush2.msra.mxu0 0.0
      %302 = vmatprep.subr.mxu0 0.0
      %303 = vmatpush2.msra.mxu0 0.0
      %304 = vmatprep.subr.mxu0 0.0
      %305 = vmatpush2.msra.mxu0 0.0
      %306 = vmatprep.subr.mxu0 0.0
      %307 = vmatpush2.msra.mxu0 0.0
      %308 = vmatprep.subr.mxu0 0.0
      %309 = vmatpush2.msra.mxu0 0.0
      %310 = vmatprep.subr.mxu0 0.0
      %311 = vmatpush2.msra.mxu0 0.0
      %312 = vmatprep.subr.mxu0 0.0
      %313 = vmatpush2.msra.mxu0 0.0
      %314 = vmatprep.mubr.f32.mxu0 0.0
      %315 = vmatmul.mubr.f32.gmra.mxu0 %v248
      %v316 = vpop.f32.mrf.mxu0
      %v317 = vadd.f32 %v244, %v316
      %v318 = vpop.f32.mrf.mxu0
      %319 = vdwg.mxu0
      %v320 = vxor.u32 %v317, 2147483648
      %v321 = vmul.f32 %v320, 1.442695
      %v322 = vpow.pop %v321
      %v323 = vadd.f32 %v322, 1.0
      %v324 = vrcp.pop %v323
      %v325 = vmul.f32 1.0, %v324
      %v326 = vlaneseq
      %v327 = vshrl.u32 %v326, 7
      %v328 = vsub.s32 0, %v327
      %v329 = vrot.slane %v325, %v328
      %331 = vbcast.lane.b32.xlu0 %v329, 256
      %v332 = vpop.permute.xlu0 %331
      %s334 = sor.u32 256, 8
      %335 = vbcast.lane.b32.xlu0 %v329, %s334
      %v336 = vpop.permute.xlu0 %335
      %s338 = sor.u32 256, 16
      %339 = vbcast.lane.b32.xlu0 %v329, %s338
      %v340 = vpop.permute.xlu0 %339
      %s342 = sor.u32 256, 24
      %343 = vbcast.lane.b32.xlu0 %v329, %s342
      %v344 = vpop.permute.xlu0 %343
      %v345 = vlaneseq
      %v346 = vshrl.u32 %v345, 7
      %v347 = vsub.s32 1, %v346
      %v348 = vrot.slane %v325, %v347
      %350 = vbcast.lane.b32.xlu0 %v348, 256
      %v351 = vpop.permute.xlu0 %350
      %s353 = sor.u32 256, 8
      %354 = vbcast.lane.b32.xlu0 %v348, %s353
      %v355 = vpop.permute.xlu0 %354
      %s357 = sor.u32 256, 16
      %358 = vbcast.lane.b32.xlu0 %v348, %s357
      %v359 = vpop.permute.xlu0 %358
      %s361 = sor.u32 256, 24
      %362 = vbcast.lane.b32.xlu0 %v348, %s361
      %v363 = vpop.permute.xlu0 %362
      %vm364 = vcmask 7168
      %365 = vst.msk [vmem:[%s5] sm:$0xff] %vm364, %v332
      %366 = vst.msk [vmem:[%s5 + $0x8] sm:$0xff] %vm364, %v336
      %367 = vst.msk [vmem:[%s5 + $0x10] sm:$0xff] %vm364, %v340
      %368 = vst.msk [vmem:[%s5 + $0x18] sm:$0xff] %vm364, %v344
      %369 = vst.msk [vmem:[%s5 + $0x20] sm:$0xff] %vm364, %v351
      %370 = vst.msk [vmem:[%s5 + $0x28] sm:$0xff] %vm364, %v355
      %371 = vst.msk [vmem:[%s5 + $0x30] sm:$0xff] %vm364, %v359
      %372 = vst.msk [vmem:[%s5 + $0x38] sm:$0xff] %vm364, %v363
    $region33: #{tpu_custom_call.1} parent=1 // pred_fallthru
      _
    // Predicated region
    $region34: #{tpu_custom_call.1} parent=1 // pred_check
      _
    $region35: #{tpu_custom_call.1} parent=1 // pred_check_branch
      %374 = sbr.rel (0) target = $region37
    $region36: #{tpu_custom_call.1} parent=1 // pred_region
      _
    $region37: #{tpu_custom_call.1} parent=1 // pred_fallthru
      _
    // Predicated region
    $region38: #{tpu_custom_call.1} parent=1 // pred_check
      _
    $region39: #{tpu_custom_call.1} parent=1 // pred_check_branch
      %376 = sbr.rel (0) target = $region41
    $region40: #{tpu_custom_call.1} parent=1 // pred_region
      _
    $region41: #{tpu_custom_call.1} parent=1 // pred_fallthru
      _
    %377 = vsyncpa [#allocation4], 1

</llo_original>
